<compile_context>
chip_gen: v7x
topology: tpu7x:2x2x1
jax: 0.10.0
libtpu: 0.0.40
codegen_flags: <defaults>
</compile_context>

<pallas_src>
import jax
import jax.numpy as jnp
from jax.experimental import pallas as pl
from jax.experimental.pallas import tpu as pltpu


def danbpe_kernel(ids_ref, wf_ref, b1_ref, w2_ref, b2_ref, out_ref):
    ids = ids_ref[...]                       # (TB, S) int32
    TB, S = ids.shape
    V = wf_ref.shape[0]

    # Averaged one-hot built directly as (TB, V): unrolled compare-accumulate
    # over the static sequence length (no (TB, S, V) intermediate).
    iota_v = jax.lax.broadcasted_iota(jnp.int32, (TB, V), 1)
    acc = jnp.zeros((TB, V), jnp.float32)
    for s in range(S):                       # S is static -> fully unrolled
        acc = acc + (ids[:, s:s + 1] == iota_v).astype(jnp.float32)
    avg_onehot = acc * (1.0 / S)             # (TB, V)

    # fc1 fused with the embedding table:  mean_s(E[ids]) @ W1  ==
    #   avg_onehot @ (E @ W1)
    h = jnp.dot(avg_onehot, wf_ref[...],
                preferred_element_type=jnp.float32) + b1_ref[...]   # (TB, H)
    h = jnp.maximum(h, 0.0)                  # ReLU

    # fc2 on the lane-padded output dim (padded cols carry a -1e30 bias).
    logits = jnp.dot(h, w2_ref[...],
                     preferred_element_type=jnp.float32) + b2_ref[...]  # (TB, 128)

    # Numerically stable log_softmax over the last dim. Padded columns are
    # ~-1e30, so exp() underflows to exactly 0 and the real columns are
    # bit-identical to the unpadded computation.
    m = jnp.max(logits, axis=1, keepdims=True)
    shifted = logits - m
    lse = jnp.log(jnp.sum(jnp.exp(shifted), axis=1, keepdims=True))
    out_ref[...] = shifted - lse


def danbpe_forward(ids, emb, w1, b1, w2, b2, *, tb=8, o_pad=128):
    B, S = ids.shape
    V, D = emb.shape
    H = w1.shape[1]
    O = w2.shape[1]

    # ---- wrapper-side (static) preprocessing --------------------------------
    # Fold the embedding table into fc1: (V, D) @ (D, H) -> (V, H).
    w_fused = jnp.dot(emb, w1, preferred_element_type=jnp.float32)

    # Lane-dense output: pad fc2 to 128 output lanes; padded logits get a huge
    # negative bias so they drop out of the log_softmax exactly.
    w2p = jnp.zeros((H, o_pad), jnp.float32).at[:, :O].set(w2)
    b2p = jnp.full((1, o_pad), -1e30, jnp.float32).at[:, :O].set(b2)

    # Pad batch to a multiple of the (sublane-aligned) batch tile.
    nb = pl.cdiv(B, tb)
    Bp = nb * tb
    ids_p = jnp.zeros((Bp, S), jnp.int32).at[:B, :].set(ids)

    out = pl.pallas_call(
        danbpe_kernel,
        out_shape=jax.ShapeDtypeStruct((Bp, o_pad), jnp.float32),
        grid_spec=pltpu.PrefetchScalarGridSpec(
            num_scalar_prefetch=0,
            grid=(nb,),
            in_specs=[
                pl.BlockSpec((tb, S), lambda i: (i, 0)),       # ids (per batch tile)
                pl.BlockSpec((V, H), lambda i: (0, 0)),        # fused E@W1 (resident)
                pl.BlockSpec((1, H), lambda i: (0, 0)),        # b1 (resident)
                pl.BlockSpec((H, o_pad), lambda i: (0, 0)),    # W2 padded (resident)
                pl.BlockSpec((1, o_pad), lambda i: (0, 0)),    # b2 padded (resident)
            ],
            out_specs=pl.BlockSpec((tb, o_pad), lambda i: (i, 0)),
        ),
        compiler_params=pltpu.CompilerParams(
            dimension_semantics=("parallel",)),
    )(ids_p, w_fused, b1, w2p, b2p)

    # Strip batch / lane padding.
    return out[:B, :O]


def danbpe_reference(ids, emb, w1, b1, w2, b2):
    embeds = emb[ids]                          # (B, S, D)
    avg = jnp.mean(embeds, axis=1)             # (B, D)
    h = jnp.maximum(avg @ w1 + b1[0], 0.0)
    logits = h @ w2 + b2[0]
    return jax.nn.log_softmax(logits, axis=1)


if __name__ == "__main__":
    vocab_size, hidden_size, output_size = 64, 32, 8
    emb_dim = 50
    B, S = 2, 8

    key = jax.random.PRNGKey(0)
    k_ids, k_emb, k_w1, k_b1, k_w2, k_b2 = jax.random.split(key, 6)

    ids = jax.random.randint(k_ids, (B, S), 0, vocab_size, dtype=jnp.int32)

    # nn.Embedding with uniform_(-0.1, 0.1)
    emb = jax.random.uniform(k_emb, (vocab_size, emb_dim), jnp.float32,
                             minval=-0.1, maxval=0.1)
    # nn.Linear default init: U(-1/sqrt(fan_in), 1/sqrt(fan_in)); weights
    # stored transposed (in, out) for row-major matmuls.
    lim1 = 1.0 / jnp.sqrt(emb_dim)
    w1 = jax.random.uniform(k_w1, (emb_dim, hidden_size), jnp.float32,
                            minval=-lim1, maxval=lim1)
    b1 = jax.random.uniform(k_b1, (1, hidden_size), jnp.float32,
                            minval=-lim1, maxval=lim1)
    lim2 = 1.0 / jnp.sqrt(hidden_size)
    w2 = jax.random.uniform(k_w2, (hidden_size, output_size), jnp.float32,
                            minval=-lim2, maxval=lim2)
    b2 = jax.random.uniform(k_b2, (1, output_size), jnp.float32,
                            minval=-lim2, maxval=lim2)

    out = danbpe_forward(ids, emb, w1, b1, w2, b2)
    out = jax.block_until_ready(out)

    ref = danbpe_reference(ids, emb, w1, b1, w2, b2)
    assert out.shape == (B, output_size)
    assert jnp.allclose(out, ref, atol=1e-5, rtol=1e-5)

    print("KERNEL_OK")
</pallas_src>

<mosaic_0001>
module attributes {stable_mosaic.version = 11 : i64} {
  func.func @danbpe_kernel(%arg0: i32, %arg1: memref<8x8xi32, #tpu.memory_space<vmem>>, %arg2: memref<64x32xf32, #tpu.memory_space<vmem>>, %arg3: memref<1x32xf32, #tpu.memory_space<vmem>>, %arg4: memref<32x128xf32, #tpu.memory_space<vmem>>, %arg5: memref<1x128xf32, #tpu.memory_space<vmem>>, %arg6: memref<8x128xf32, #tpu.memory_space<vmem>>) attributes {dimension_semantics = [#tpu.dimension_semantics<parallel>], iteration_bounds = array<i64: 1>, scalar_prefetch = 0 : i64, scratch_operands = 0 : i64, tpu.core_type = #tpu.core_type<tc>, window_params = [{transform_indices = @transform_0, window_bounds = array<i64: 8, 8>}, {pipeline_mode = #tpu.pipeline_mode<synchronous>, transform_indices = @transform_1, window_bounds = array<i64: 64, 32>}, {pipeline_mode = #tpu.pipeline_mode<synchronous>, transform_indices = @transform_2, window_bounds = array<i64: 1, 32>}, {pipeline_mode = #tpu.pipeline_mode<synchronous>, transform_indices = @transform_3, window_bounds = array<i64: 32, 128>}, {pipeline_mode = #tpu.pipeline_mode<synchronous>, transform_indices = @transform_4, window_bounds = array<i64: 1, 128>}, {transform_indices = @transform_5, window_bounds = array<i64: 8, 128>}]} {
    %c0 = arith.constant 0 : index
    %c0_0 = arith.constant 0 : index
    %0 = vector.load %arg1[%c0, %c0_0] : memref<8x8xi32, #tpu.memory_space<vmem>>, vector<8x8xi32>
    %1 = tpu.iota {dimensions = array<i32: 1>} : vector<8x64xi32>
    %cst = arith.constant 0.000000e+00 : f32
    %2 = vector.broadcast %cst : f32 to vector<8x64xf32>
    %3 = vector.extract_strided_slice %0 {offsets = [0, 0], sizes = [8, 1], strides = [1, 1]} : vector<8x8xi32> to vector<8x1xi32>
    %4 = vector.broadcast %3 : vector<8x1xi32> to vector<8x64xi32>
    %5 = arith.cmpi eq, %4, %1 : vector<8x64xi32>
    %6 = arith.extui %5 : vector<8x64xi1> to vector<8x64xi32>
    %7 = arith.sitofp %6 : vector<8x64xi32> to vector<8x64xf32>
    %8 = arith.addf %2, %7 : vector<8x64xf32>
    %9 = vector.extract_strided_slice %0 {offsets = [0, 1], sizes = [8, 1], strides = [1, 1]} : vector<8x8xi32> to vector<8x1xi32>
    %10 = vector.broadcast %9 : vector<8x1xi32> to vector<8x64xi32>
    %11 = arith.cmpi eq, %10, %1 : vector<8x64xi32>
    %12 = arith.extui %11 : vector<8x64xi1> to vector<8x64xi32>
    %13 = arith.sitofp %12 : vector<8x64xi32> to vector<8x64xf32>
    %14 = arith.addf %8, %13 : vector<8x64xf32>
    %15 = vector.extract_strided_slice %0 {offsets = [0, 2], sizes = [8, 1], strides = [1, 1]} : vector<8x8xi32> to vector<8x1xi32>
    %16 = vector.broadcast %15 : vector<8x1xi32> to vector<8x64xi32>
    %17 = arith.cmpi eq, %16, %1 : vector<8x64xi32>
    %18 = arith.extui %17 : vector<8x64xi1> to vector<8x64xi32>
    %19 = arith.sitofp %18 : vector<8x64xi32> to vector<8x64xf32>
    %20 = arith.addf %14, %19 : vector<8x64xf32>
    %21 = vector.extract_strided_slice %0 {offsets = [0, 3], sizes = [8, 1], strides = [1, 1]} : vector<8x8xi32> to vector<8x1xi32>
    %22 = vector.broadcast %21 : vector<8x1xi32> to vector<8x64xi32>
    %23 = arith.cmpi eq, %22, %1 : vector<8x64xi32>
    %24 = arith.extui %23 : vector<8x64xi1> to vector<8x64xi32>
    %25 = arith.sitofp %24 : vector<8x64xi32> to vector<8x64xf32>
    %26 = arith.addf %20, %25 : vector<8x64xf32>
    %27 = vector.extract_strided_slice %0 {offsets = [0, 4], sizes = [8, 1], strides = [1, 1]} : vector<8x8xi32> to vector<8x1xi32>
    %28 = vector.broadcast %27 : vector<8x1xi32> to vector<8x64xi32>
    %29 = arith.cmpi eq, %28, %1 : vector<8x64xi32>
    %30 = arith.extui %29 : vector<8x64xi1> to vector<8x64xi32>
    %31 = arith.sitofp %30 : vector<8x64xi32> to vector<8x64xf32>
    %32 = arith.addf %26, %31 : vector<8x64xf32>
    %33 = vector.extract_strided_slice %0 {offsets = [0, 5], sizes = [8, 1], strides = [1, 1]} : vector<8x8xi32> to vector<8x1xi32>
    %34 = vector.broadcast %33 : vector<8x1xi32> to vector<8x64xi32>
    %35 = arith.cmpi eq, %34, %1 : vector<8x64xi32>
    %36 = arith.extui %35 : vector<8x64xi1> to vector<8x64xi32>
    %37 = arith.sitofp %36 : vector<8x64xi32> to vector<8x64xf32>
    %38 = arith.addf %32, %37 : vector<8x64xf32>
    %39 = vector.extract_strided_slice %0 {offsets = [0, 6], sizes = [8, 1], strides = [1, 1]} : vector<8x8xi32> to vector<8x1xi32>
    %40 = vector.broadcast %39 : vector<8x1xi32> to vector<8x64xi32>
    %41 = arith.cmpi eq, %40, %1 : vector<8x64xi32>
    %42 = arith.extui %41 : vector<8x64xi1> to vector<8x64xi32>
    %43 = arith.sitofp %42 : vector<8x64xi32> to vector<8x64xf32>
    %44 = arith.addf %38, %43 : vector<8x64xf32>
    %45 = vector.extract_strided_slice %0 {offsets = [0, 7], sizes = [8, 1], strides = [1, 1]} : vector<8x8xi32> to vector<8x1xi32>
    %46 = vector.broadcast %45 : vector<8x1xi32> to vector<8x64xi32>
    %47 = arith.cmpi eq, %46, %1 : vector<8x64xi32>
    %48 = arith.extui %47 : vector<8x64xi1> to vector<8x64xi32>
    %49 = arith.sitofp %48 : vector<8x64xi32> to vector<8x64xf32>
    %50 = arith.addf %44, %49 : vector<8x64xf32>
    %cst_1 = arith.constant 1.250000e-01 : f32
    %51 = vector.broadcast %cst_1 : f32 to vector<8x64xf32>
    %52 = arith.mulf %50, %51 : vector<8x64xf32>
    %c0_2 = arith.constant 0 : index
    %c0_3 = arith.constant 0 : index
    %53 = vector.load %arg2[%c0_2, %c0_3] : memref<64x32xf32, #tpu.memory_space<vmem>>, vector<64x32xf32>
    %cst_4 = arith.constant dense<0.000000e+00> : vector<8x32xf32>
    %54 = tpu.matmul %52, %53, %cst_4 {dimension_numbers = #tpu.dot_dimension_numbers<[1], [0], [0], [1], [0, 0, 1, 1], [], []>} : vector<8x64xf32>, vector<64x32xf32>, vector<8x32xf32> -> vector<8x32xf32>
    %c0_5 = arith.constant 0 : index
    %c0_6 = arith.constant 0 : index
    %55 = vector.load %arg3[%c0_5, %c0_6] : memref<1x32xf32, #tpu.memory_space<vmem>>, vector<1x32xf32>
    %56 = vector.broadcast %55 : vector<1x32xf32> to vector<8x32xf32>
    %57 = arith.addf %54, %56 : vector<8x32xf32>
    %cst_7 = arith.constant 0.000000e+00 : f32
    %58 = vector.broadcast %cst_7 : f32 to vector<8x32xf32>
    %59 = arith.maximumf %57, %58 : vector<8x32xf32>
    %c0_8 = arith.constant 0 : index
    %c0_9 = arith.constant 0 : index
    %60 = vector.load %arg4[%c0_8, %c0_9] : memref<32x128xf32, #tpu.memory_space<vmem>>, vector<32x128xf32>
    %cst_10 = arith.constant dense<0.000000e+00> : vector<8x128xf32>
    %61 = tpu.matmul %59, %60, %cst_10 {dimension_numbers = #tpu.dot_dimension_numbers<[1], [0], [0], [1], [0, 0, 1, 1], [], []>} : vector<8x32xf32>, vector<32x128xf32>, vector<8x128xf32> -> vector<8x128xf32>
    %c0_11 = arith.constant 0 : index
    %c0_12 = arith.constant 0 : index
    %62 = vector.load %arg5[%c0_11, %c0_12] : memref<1x128xf32, #tpu.memory_space<vmem>>, vector<1x128xf32>
    %63 = vector.broadcast %62 : vector<1x128xf32> to vector<8x128xf32>
    %64 = arith.addf %61, %63 : vector<8x128xf32>
    %cst_13 = arith.constant dense<0xFF800000> : vector<8xf32>
    %65 = vector.multi_reduction <maximumf>, %64, %cst_13 [1] : vector<8x128xf32> to vector<8xf32>
    %66 = vector.shape_cast %65 : vector<8xf32> to vector<8x1xf32>
    %67 = vector.broadcast %66 : vector<8x1xf32> to vector<8x128xf32>
    %68 = arith.subf %64, %67 : vector<8x128xf32>
    %69 = math.exp %68 : vector<8x128xf32>
    %cst_14 = arith.constant dense<0.000000e+00> : vector<8xf32>
    %70 = vector.multi_reduction <add>, %69, %cst_14 [1] : vector<8x128xf32> to vector<8xf32>
    %71 = vector.shape_cast %70 : vector<8xf32> to vector<8x1xf32>
    %72 = math.log %71 : vector<8x1xf32>
    %73 = vector.broadcast %72 : vector<8x1xf32> to vector<8x128xf32>
    %74 = arith.subf %68, %73 : vector<8x128xf32>
    %c0_15 = arith.constant 0 : index
    %c0_16 = arith.constant 0 : index
    %75 = vector.load %arg6[%c0_15, %c0_16] : memref<8x128xf32, #tpu.memory_space<vmem>>, vector<8x128xf32>
    tpu.vector_store %arg6[%c0_15, %c0_16], %74 {strides = array<i32>} : memref<8x128xf32, #tpu.memory_space<vmem>>, vector<8x128xf32>,
    return
  }
  func.func @transform_0(%arg0: i32) -> (i32, i32) {
    %c0_i32 = arith.constant 0 : i32
    %c0_i32_0 = arith.constant 0 : i32
    return %arg0, %c0_i32 : i32, i32
  }
  func.func @transform_1(%arg0: i32) -> (i32, i32) {
    %c0_i32 = arith.constant 0 : i32
    %c0_i32_0 = arith.constant 0 : i32
    %c0_i32_1 = arith.constant 0 : i32
    return %c0_i32, %c0_i32_0 : i32, i32
  }
  func.func @transform_2(%arg0: i32) -> (i32, i32) {
    %c0_i32 = arith.constant 0 : i32
    %c0_i32_0 = arith.constant 0 : i32
    %c0_i32_1 = arith.constant 0 : i32
    return %c0_i32, %c0_i32_0 : i32, i32
  }
  func.func @transform_3(%arg0: i32) -> (i32, i32) {
    %c0_i32 = arith.constant 0 : i32
    %c0_i32_0 = arith.constant 0 : i32
    %c0_i32_1 = arith.constant 0 : i32
    return %c0_i32, %c0_i32_0 : i32, i32
  }
  func.func @transform_4(%arg0: i32) -> (i32, i32) {
    %c0_i32 = arith.constant 0 : i32
    %c0_i32_0 = arith.constant 0 : i32
    %c0_i32_1 = arith.constant 0 : i32
    return %c0_i32, %c0_i32_0 : i32, i32
  }
  func.func @transform_5(%arg0: i32) -> (i32, i32) {
    %c0_i32 = arith.constant 0 : i32
    %c0_i32_0 = arith.constant 0 : i32
    return %arg0, %c0_i32 : i32, i32
  }
}

</mosaic_0001>

<llo_original>
// kernel: tpu_custom_call.1
$region0: #{tpu_custom_call.1}
  #allocation0 [shape = 'u32[]', space=smem, size = 0x4, offset = 0x4, fixed_abs, tag = 'smem constant byte address 0x4 - core index']
  #allocation1 [shape = 'u32[144,128]{1,0:T(1,128)}', space=vmem, size = 0x12000, scoped, tag = 'internal scratch']
  %s0 = inlined_call_operand.vmem [shape: s32[8,8], index: 0, kind: input, shape index: {}]
  %s1 = inlined_call_operand.vmem [shape: f32[64,32], index: 1, kind: input, shape index: {}]
  %s2 = inlined_call_operand.vmem [shape: f32[1,32], index: 2, kind: input, shape index: {}]
  %s3 = inlined_call_operand.vmem [shape: f32[32,128], index: 3, kind: input, shape index: {}]
  %s4 = inlined_call_operand.vmem [shape: f32[1,128], index: 4, kind: input, shape index: {}]
  %s5 = inlined_call_operand.hbm [shape: f32[8,128], index: 5, kind: output, shape index: {}]
  %s6 = sld [smem:[#allocation0]]
  $region30: #{tpu_custom_call.1} parent=0
    _
  %s8 = ssub.s32 1, %s6
  %s9 = scalar_select 0, %s8, %s6
  $region1: #{tpu_custom_call.1} parent=0
    #allocation2 [shape = 'u8[4096]{0}', space=vmem, size = 0x1000, scoped, tag = 'output window, operand 0, single buffered']
    #allocation3 [shape = 's32[1]{0}', space=sflag, size = 0x4, scoped, tag = 'scoped memory for tpu_custom_call.1']
    %10 = vsyncpa [#allocation3], 0
    // Predicated region
    $region2: #{tpu_custom_call.1} parent=1 // pred_check
      _
    $region3: #{tpu_custom_call.1} parent=1 // pred_check_branch
      %12 = sbr.rel (0) target = $region5
    $region4: #{tpu_custom_call.1} parent=1 // pred_region
      _
    $region5: #{tpu_custom_call.1} parent=1 // pred_fallthru
      _
    // Predicated region
    $region6: #{tpu_custom_call.1} parent=1 // pred_check
      _
    $region7: #{tpu_custom_call.1} parent=1 // pred_check_branch
      %14 = sbr.rel (0) target = $region9
    $region8: #{tpu_custom_call.1} parent=1 // pred_region
      _
    $region9: #{tpu_custom_call.1} parent=1 // pred_fallthru
      _
    // Predicated region
    $region10: #{tpu_custom_call.1} parent=1 // pred_check
      _
    $region11: #{tpu_custom_call.1} parent=1 // pred_check_branch
      %16 = sbr.rel (0) target = $region13
    $region12: #{tpu_custom_call.1} parent=1 // pred_region
      _
    $region13: #{tpu_custom_call.1} parent=1 // pred_fallthru
      _
    // Predicated region
    $region14: #{tpu_custom_call.1} parent=1 // pred_check
      _
    $region15: #{tpu_custom_call.1} parent=1 // pred_check_branch
      %18 = sbr.rel (0) target = $region17
    $region16: #{tpu_custom_call.1} parent=1 // pred_region
      _
    $region17: #{tpu_custom_call.1} parent=1 // pred_fallthru
      _
    // Predicated region
    $region18: #{tpu_custom_call.1} parent=1 // pred_check
      _
    $region19: #{tpu_custom_call.1} parent=1 // pred_check_branch
      %20 = sbr.rel (0) target = $region21
    $region20: #{tpu_custom_call.1} parent=1 // pred_region
      _
    $region21: #{tpu_custom_call.1} parent=1 // pred_fallthru
      _
    %v21 = vld [vmem:[%s0] sm:$0xff]
    %v22 = vlaneseq
    %v23 = vand.u32 %v22, 127
    %24 = vset.pattern.permute.xlu0 0
    %25 = vperm.xlu0 %24, %v21
    %v26 = vpop.permute.xlu0 %25
    %vm27 = vcmp.eq.s32.totalorder %v26, %v23
    %v28 = vsel %vm27, 1, 0
    %v29 = vcvt.s32.f32 %v28
    %v30 = vadd.f32 %v29, 0.0
    %31 = vset.pattern.permute.xlu0 1
    %32 = vperm.xlu0 %31, %v21
    %v33 = vpop.permute.xlu0 %32
    %vm34 = vcmp.eq.s32.totalorder %v33, %v23
    %v35 = vsel %vm34, 1, 0
    %v36 = vcvt.s32.f32 %v35
    %v37 = vadd.f32 %v30, %v36
    %38 = vset.pattern.permute.xlu0 2
    %39 = vperm.xlu0 %38, %v21
    %v40 = vpop.permute.xlu0 %39
    %vm41 = vcmp.eq.s32.totalorder %v40, %v23
    %v42 = vsel %vm41, 1, 0
    %v43 = vcvt.s32.f32 %v42
    %v44 = vadd.f32 %v37, %v43
    %45 = vset.pattern.permute.xlu0 3
    %46 = vperm.xlu0 %45, %v21
    %v47 = vpop.permute.xlu0 %46
    %vm48 = vcmp.eq.s32.totalorder %v47, %v23
    %v49 = vsel %vm48, 1, 0
    %v50 = vcvt.s32.f32 %v49
    %v51 = vadd.f32 %v44, %v50
    %52 = vset.pattern.permute.xlu0 4
    %53 = vperm.xlu0 %52, %v21
    %v54 = vpop.permute.xlu0 %53
    %vm55 = vcmp.eq.s32.totalorder %v54, %v23
    %v56 = vsel %vm55, 1, 0
    %v57 = vcvt.s32.f32 %v56
    %v58 = vadd.f32 %v51, %v57
    %59 = vset.pattern.permute.xlu0 5
    %60 = vperm.xlu0 %59, %v21
    %v61 = vpop.permute.xlu0 %60
    %vm62 = vcmp.eq.s32.totalorder %v61, %v23
    %v63 = vsel %vm62, 1, 0
    %v64 = vcvt.s32.f32 %v63
    %v65 = vadd.f32 %v58, %v64
    %66 = vset.pattern.permute.xlu0 6
    %67 = vperm.xlu0 %66, %v21
    %v68 = vpop.permute.xlu0 %67
    %vm69 = vcmp.eq.s32.totalorder %v68, %v23
    %v70 = vsel %vm69, 1, 0
    %v71 = vcvt.s32.f32 %v70
    %v72 = vadd.f32 %v65, %v71
    %73 = vset.pattern.permute.xlu0 7
    %74 = vperm.xlu0 %73, %v21
    %v75 = vpop.permute.xlu0 %74
    %vm76 = vcmp.eq.s32.totalorder %v75, %v23
    %v77 = vsel %vm76, 1, 0
    %v78 = vcvt.s32.f32 %v77
    %v79 = vadd.f32 %v72, %v78
    %v80 = vmul.f32 %v79, 0.125
    %v81 = vld [vmem:[%s1] sm:$0xff]
    %v82 = vld [vmem:[%s1 + $0x8] sm:$0xff]
    %v83 = vld [vmem:[%s1 + $0x10] sm:$0xff]
    %v84 = vld [vmem:[%s1 + $0x18] sm:$0xff]
    %v85 = vld [vmem:[%s1 + $0x20] sm:$0xff]
    %v86 = vld [vmem:[%s1 + $0x28] sm:$0xff]
    %v87 = vld [vmem:[%s1 + $0x30] sm:$0xff]
    %v88 = vld [vmem:[%s1 + $0x38] sm:$0xff]
    %v89 = vld [vmem:[%s2] sm:$0x1]
    %v91 = vlaneseq
    %v92 = vshrl.u32 %v91, 7
    %v93 = vsub.s32 0, %v92
    %v94 = vrot.slane %v89, %v93
    %vm96 = vcmask 523264
    %v98 = vsel %vm96, %v80, 0
    %100 = vmatprep.subr.mxu0 0.0
    %101 = vmatpush1.msra.mxu0 %v81
    %102 = vmatprep.subr.mxu0 0.0
    %103 = vmatpush1.msra.mxu0 %v82
    %104 = vmatprep.subr.mxu0 0.0
    %105 = vmatpush1.msra.mxu0 %v83
    %106 = vmatprep.subr.mxu0 0.0
    %107 = vmatpush1.msra.mxu0 %v84
    %108 = vmatprep.subr.mxu0 0.0
    %109 = vmatpush1.msra.mxu0 %v85
    %110 = vmatprep.subr.mxu0 0.0
    %111 = vmatpush1.msra.mxu0 %v86
    %112 = vmatprep.subr.mxu0 0.0
    %113 = vmatpush1.msra.mxu0 %v87
    %114 = vmatprep.subr.mxu0 0.0
    %115 = vmatpush1.msra.mxu0 %v88
    %116 = vmatprep.subr.mxu0 0.0
    %117 = vmatpush1.msra.mxu0 0.0
    %118 = vmatprep.subr.mxu0 0.0
    %119 = vmatpush1.msra.mxu0 0.0
    %120 = vmatprep.subr.mxu0 0.0
    %121 = vmatpush1.msra.mxu0 0.0
    %122 = vmatprep.subr.mxu0 0.0
    %123 = vmatpush1.msra.mxu0 0.0
    %124 = vmatprep.subr.mxu0 0.0
    %125 = vmatpush1.msra.mxu0 0.0
    %126 = vmatprep.subr.mxu0 0.0
    %127 = vmatpush1.msra.mxu0 0.0
    %128 = vmatprep.subr.mxu0 0.0
    %129 = vmatpush1.msra.mxu0 0.0
    %130 = vmatprep.subr.mxu0 0.0
    %131 = vmatpush1.msra.mxu0 0.0
    %132 = vmatprep.subr.mxu0 0.0
    %133 = vmatpush1.msra.mxu0 0.0
    %134 = vmatprep.subr.mxu0 0.0
    %135 = vmatpush1.msra.mxu0 0.0
    %136 = vmatprep.subr.mxu0 0.0
    %137 = vmatpush1.msra.mxu0 0.0
    %138 = vmatprep.subr.mxu0 0.0
    %139 = vmatpush1.msra.mxu0 0.0
    %140 = vmatprep.subr.mxu0 0.0
    %141 = vmatpush1.msra.mxu0 0.0
    %142 = vmatprep.subr.mxu0 0.0
    %143 = vmatpush1.msra.mxu0 0.0
    %144 = vmatprep.subr.mxu0 0.0
    %145 = vmatpush1.msra.mxu0 0.0
    %146 = vmatprep.subr.mxu0 0.0
    %147 = vmatpush1.msra.mxu0 0.0
    %148 = vmatprep.subr.mxu0 0.0
    %149 = vmatpush1.msra.mxu0 0.0
    %150 = vmatprep.subr.mxu0 0.0
    %151 = vmatpush1.msra.mxu0 0.0
    %152 = vmatprep.subr.mxu0 0.0
    %153 = vmatpush1.msra.mxu0 0.0
    %154 = vmatprep.subr.mxu0 0.0
    %155 = vmatpush1.msra.mxu0 0.0
    %156 = vmatprep.subr.mxu0 0.0
    %157 = vmatpush1.msra.mxu0 0.0
    %158 = vmatprep.subr.mxu0 0.0
    %159 = vmatpush1.msra.mxu0 0.0
    %160 = vmatprep.subr.mxu0 0.0
    %161 = vmatpush1.msra.mxu0 0.0
    %162 = vmatprep.subr.mxu0 0.0
    %163 = vmatpush1.msra.mxu0 0.0
    %164 = vmatprep.mubr.f32.mxu0 0.0
    %165 = vmatmul.mubr.f32.gmra.mrb[0].mxu0 %v98
    %v166 = vpop.f32.mrb[0].mxu0
    %v167 = vadd.f32 %v94, %v166
    %v168 = vpop.f32.mrb[0].mxu0
    %169 = vdwg.mxu0
    %v170 = vmax.f32 %v167, 0.0
    %v171 = vld [vmem:[%s3] sm:$0xff]
    %v172 = vld [vmem:[%s3 + $0x8] sm:$0xff]
    %v173 = vld [vmem:[%s3 + $0x10] sm:$0xff]
    %v174 = vld [vmem:[%s3 + $0x18] sm:$0xff]
    %v175 = vld [vmem:[%s4] sm:$0x1]
    %v177 = vlaneseq
    %v178 = vshrl.u32 %v177, 7
    %v179 = vsub.s32 0, %v178
    %v180 = vrot.slane %v175, %v179
    %vm182 = vcmask 261120
    %v184 = vsel %vm182, %v170, 0
    %186 = vmatprep.subr.mxu0 0.0
    %187 = vmatpush1.msra.mxu0 %v171
    %188 = vmatprep.subr.mxu0 0.0
    %189 = vmatpush1.msra.mxu0 %v172
    %190 = vmatprep.subr.mxu0 0.0
    %191 = vmatpush1.msra.mxu0 %v173
    %192 = vmatprep.subr.mxu0 0.0
    %193 = vmatpush1.msra.mxu0 %v174
    %194 = vmatprep.subr.mxu0 0.0
    %195 = vmatpush1.msra.mxu0 0.0
    %196 = vmatprep.subr.mxu0 0.0
    %197 = vmatpush1.msra.mxu0 0.0
    %198 = vmatprep.subr.mxu0 0.0
    %199 = vmatpush1.msra.mxu0 0.0
    %200 = vmatprep.subr.mxu0 0.0
    %201 = vmatpush1.msra.mxu0 0.0
    %202 = vmatprep.subr.mxu0 0.0
    %203 = vmatpush1.msra.mxu0 0.0
    %204 = vmatprep.subr.mxu0 0.0
    %205 = vmatpush1.msra.mxu0 0.0
    %206 = vmatprep.subr.mxu0 0.0
    %207 = vmatpush1.msra.mxu0 0.0
    %208 = vmatprep.subr.mxu0 0.0
    %209 = vmatpush1.msra.mxu0 0.0
    %210 = vmatprep.subr.mxu0 0.0
    %211 = vmatpush1.msra.mxu0 0.0
    %212 = vmatprep.subr.mxu0 0.0
    %213 = vmatpush1.msra.mxu0 0.0
    %214 = vmatprep.subr.mxu0 0.0
    %215 = vmatpush1.msra.mxu0 0.0
    %216 = vmatprep.subr.mxu0 0.0
    %217 = vmatpush1.msra.mxu0 0.0
    %218 = vmatprep.subr.mxu0 0.0
    %219 = vmatpush1.msra.mxu0 0.0
    %220 = vmatprep.subr.mxu0 0.0
    %221 = vmatpush1.msra.mxu0 0.0
    %222 = vmatprep.subr.mxu0 0.0
    %223 = vmatpush1.msra.mxu0 0.0
    %224 = vmatprep.subr.mxu0 0.0
    %225 = vmatpush1.msra.mxu0 0.0
    %226 = vmatprep.subr.mxu0 0.0
    %227 = vmatpush1.msra.mxu0 0.0
    %228 = vmatprep.subr.mxu0 0.0
    %229 = vmatpush1.msra.mxu0 0.0
    %230 = vmatprep.subr.mxu0 0.0
    %231 = vmatpush1.msra.mxu0 0.0
    %232 = vmatprep.subr.mxu0 0.0
    %233 = vmatpush1.msra.mxu0 0.0
    %234 = vmatprep.subr.mxu0 0.0
    %235 = vmatpush1.msra.mxu0 0.0
    %236 = vmatprep.subr.mxu0 0.0
    %237 = vmatpush1.msra.mxu0 0.0
    %238 = vmatprep.subr.mxu0 0.0
    %239 = vmatpush1.msra.mxu0 0.0
    %240 = vmatprep.subr.mxu0 0.0
    %241 = vmatpush1.msra.mxu0 0.0
    %242 = vmatprep.subr.mxu0 0.0
    %243 = vmatpush1.msra.mxu0 0.0
    %244 = vmatprep.subr.mxu0 0.0
    %245 = vmatpush1.msra.mxu0 0.0
    %246 = vmatprep.subr.mxu0 0.0
    %247 = vmatpush1.msra.mxu0 0.0
    %248 = vmatprep.subr.mxu0 0.0
    %249 = vmatpush1.msra.mxu0 0.0
    %250 = vmatprep.mubr.f32.mxu0 0.0
    %251 = vmatmul.mubr.f32.gmra.mrb[0].mxu0 %v184
    %v252 = vpop.f32.mrb[0].mxu0
    %v253 = vadd.f32 %v180, %v252
    %v254 = vpop.f32.mrb[0].mxu0
    %255 = vdwg.mxu0
    %256 = vmax.xlane.f32.xlu0 %v253
    %v257 = vpop.xlane.xlu0 %256
    %v258 = vsub.f32 %v253, %v257
    %v259 = vmul.f32 %v258, 1.442695
    %v260 = vpow.pop %v259
    %261 = vadd.xlane.f32.xlu0 %v260
    %v262 = vpop.xlane.xlu0 %261
    %v263 = vlog2.pop %v262
    %v264 = vmul.f32 %v263, 0.6931472
    %v265 = vsub.f32 %v258, %v264
    %266 = vst [vmem:[#allocation2] sm:$0xff] %v265
    // Predicated region
    $region22: #{tpu_custom_call.1} parent=1 // pred_check
      _
    $region23: #{tpu_custom_call.1} parent=1 // pred_check_branch
      %268 = sbr.rel (0) target = $region25
    $region24: #{tpu_custom_call.1} parent=1 // pred_region
      %s270 = ssub.s32 128, 128
      %271 = vsyncadd [#allocation3], %s270
      %s273 = sshll.u32 [#allocation2], 4
      %s274 = int_to_ptr.vmem [resolvable:$true] %s273
      %276 = dma.vmem_to_hbm [thread:$0]  %s274, 128, %s5, [#allocation3]
    $region25: #{tpu_custom_call.1} parent=1 // pred_fallthru
      _
    // Predicated region
    $region26: #{tpu_custom_call.1} parent=1 // pred_check
      _
    $region27: #{tpu_custom_call.1} parent=1 // pred_check_branch
      %278 = sbr.rel (0) target = $region29
    $region28: #{tpu_custom_call.1} parent=1 // pred_region
      %279 = dma.done [#allocation3], 128
    $region29: #{tpu_custom_call.1} parent=1 // pred_fallthru
      _
    %280 = vsyncpa [#allocation3], 1

</llo_original>
